<compile_context>
chip_gen: v6e
topology: v6e:2x2x1
jax: 0.10.0
libtpu: 0.0.40
codegen_flags: <defaults>
</compile_context>

<pallas_src>
import functools

import jax
import jax.numpy as jnp
from jax import lax
from jax.experimental import pallas as pl
from jax.experimental.pallas import tpu as pltpu

SIGMA = 0.03
ALPHA = 1.0
MASK_VALUE = -1e-8


def _roll(x, shift, axis):
    # Non-negative rotation amount (circular); semantics match jnp.roll.
    n = x.shape[axis]
    return pltpu.roll(x, shift=shift % n, axis=axis)


# ---------------------------------------------------------------------------
# Kernel 1: Sobel edge magnitude + |cos|, |sin| of the gradient direction.
# ---------------------------------------------------------------------------
def _edge_kernel(img_ref, edges_ref, abscos_ref, abssin_ref, *, H, W):
    bn = img_ref.shape[0]

    # Border mask: PyTorch does a VALID conv then zero-pads the *output* by 1,
    # so the border of every (H, W) map is exactly zero.  (Hoisted out of loop.)
    row = lax.broadcasted_iota(jnp.int32, (H, W), 0)
    col = lax.broadcasted_iota(jnp.int32, (H, W), 1)
    interior = (row >= 1) & (row <= H - 2) & (col >= 1) & (col <= W - 2)

    for b in range(bn):  # small static unroll (bn <= 8)
        x = img_ref[b]                      # (H, W)
        xl = _roll(x, 1, 1)                 # x[:, c-1] (wrap — masked later)
        xr = _roll(x, -1, 1)                # x[:, c+1]
        d = xr - xl                         # horizontal difference  [-1, 0, 1]
        s = xl + 2.0 * x + xr               # horizontal smoothing   [ 1, 2, 1]
        # Separable Sobel (cross-correlation, matches F.conv2d):
        gx = _roll(d, 1, 0) + 2.0 * d + _roll(d, -1, 0)   # rows [1,2,1]
        gy = _roll(s, 1, 0) - _roll(s, -1, 0)             # rows [1,0,-1]
        gx = jnp.where(interior, gx, 0.0)
        gy = jnp.where(interior, gy, 0.0)

        mag = jnp.sqrt(gx * gx + gy * gy)
        inv = 1.0 / jnp.maximum(mag, 1e-30)
        pos = mag > 0.0

        edges_ref[b] = mag
        # |cos(atan2(gy,gx))| = |gx|/mag ; |sin| = |gy|/mag ; atan2(0,0)=0.
        abscos_ref[b] = jnp.where(pos, jnp.abs(gx) * inv, 1.0)
        abssin_ref[b] = jnp.where(pos, jnp.abs(gy) * inv, 0.0)


def _pick_batch_block(N, H, W, budget_bytes=4 << 20):
    per_img = H * W * 4 * 8              # 1 input + 3 outputs, double-buffered
    bn = max(1, min(N, budget_bytes // max(per_img, 1)))
    bn = min(bn, 8)                      # bound the static unroll
    if N >= 2:
        bn = min(bn, N // 2)             # keep >=2 grid steps (v7x megacore)
    bn = max(bn, 1)
    while N % bn:
        bn -= 1
    return bn


def get_edge(images_1ch):
    """images_1ch: (N, H, W) float32 -> (edges, |cos(theta)|, |sin(theta)|)."""
    N, H, W = images_1ch.shape
    bn = _pick_batch_block(N, H, W)
    kernel = functools.partial(_edge_kernel, H=H, W=W)
    spec = pl.BlockSpec((bn, H, W), lambda i: (i, 0, 0))
    # TODO(synk): outputs stay (bn, H, W); for W far from a multiple of 128 a
    # lane-dense repack would need an in-kernel relayout, skipped for safety.
    edges, abs_cos, abs_sin = pl.pallas_call(
        kernel,
        out_shape=tuple(jax.ShapeDtypeStruct((N, H, W), jnp.float32)
                        for _ in range(3)),
        grid=(N // bn,),
        in_specs=[spec],
        out_specs=(spec, spec, spec),
        compiler_params=pltpu.CompilerParams(dimension_semantics=("parallel",)),
    )(images_1ch.astype(jnp.float32))
    return edges, abs_cos, abs_sin


# ---------------------------------------------------------------------------
# Kernel 2: per-batch ranking loss over the sampled pairs (M-tiled reduction).
# ---------------------------------------------------------------------------
def _pair_loss_kernel(iA_ref, iB_ref, tA_ref, tB_ref, mA_ref, mB_ref,
                      out_ref, acc_ref, *, sigma, alpha, m_total):
    m = pl.program_id(1)

    @pl.when(m == 0)
    def _():
        acc_ref[...] = jnp.zeros_like(acc_ref)

    iA = iA_ref[...]
    iB = iB_ref[...]
    tA = tA_ref[...]
    tB = tB_ref[...]
    cm = mA_ref[...] * mB_ref[...]                      # consistency mask

    ratio = (tA + 1e-6) / (tB + 1e-6)
    hi = 1.0 + sigma
    lo = 1.0 / (1.0 + sigma)

    meq = jnp.logical_and(ratio < hi, ratio > lo).astype(jnp.float32)
    labels = jnp.where(ratio >= hi, 1.0, jnp.where(ratio <= lo, -1.0, 0.0))

    diff = iA - iB
    equal_term = diff * diff * meq
    # stable softplus: log(1+exp(z)) = max(z,0) + log(1+exp(-|z|))
    z = (iB - iA) * labels
    softplus = jnp.maximum(z, 0.0) + jnp.log(1.0 + jnp.exp(-jnp.abs(z)))
    unequal_term = softplus * (1.0 - meq)

    # Single fused reduction: alpha*mean(eq) + mean(uneq) == mean(alpha*eq+uneq)
    partial = jnp.sum((alpha * equal_term + unequal_term) * cm)
    acc_ref[...] = acc_ref[...] + partial

    @pl.when(m == pl.num_programs(1) - 1)
    def _():
        out_ref[...] = acc_ref[...] * (1.0 / m_total)


def _pick_m_tile(M, max_elems=32768):
    if M <= max_elems:
        return M
    t = (max_elems // 128) * 128
    while t >= 128:
        if M % t == 0:
            return t
        t -= 128
    # TODO(synk): no 128-multiple divisor of M — fall back to one full-M block.
    return M


def _pair_loss(iA, iB, tA, tB, mA, mB, sigma, alpha):
    """All inputs: (N, M) float32. Returns (N,) per-batch loss."""
    N, M = iA.shape
    tm = _pick_m_tile(M)
    grid_m = M // tm
    kernel = functools.partial(_pair_loss_kernel, sigma=sigma, alpha=alpha,
                               m_total=M)
    in_spec = pl.BlockSpec((1, 1, tm), lambda b, m: (b, 0, m))

    cp = dict(dimension_semantics=("parallel", "arbitrary"))
    est_vmem = 6 * tm * 4 * 2            # 6 inputs, double-buffered
    if est_vmem > (12 << 20):            # only the no-divisor fallback path
        cp["vmem_limit_bytes"] = int(min(est_vmem * 2, 100 << 20))

    def r3(x):
        return x.reshape(N, 1, M)

    out = pl.pallas_call(
        kernel,
        out_shape=jax.ShapeDtypeStruct((N, 1, 128), jnp.float32),
        grid=(N, grid_m),
        in_specs=[in_spec] * 6,
        out_specs=pl.BlockSpec((1, 1, 128), lambda b, m: (b, 0, 0)),
        scratch_shapes=[pltpu.VMEM((1, 1, 128), jnp.float32)],
        compiler_params=pltpu.CompilerParams(**cp),
    )(r3(iA), r3(iB), r3(tA), r3(tB), r3(mA), r3(mB))
    return out[:, 0, 0]


# ---------------------------------------------------------------------------
# Glue: edge-guided sampling (RNG / dynamic gathers stay in plain JAX, vmapped).
# ---------------------------------------------------------------------------
def edge_guided_sampling(key, inputs_f, targets_f, masks_f, edges_f,
                         abscos_f, abssin_f, *, h, w, sample_num):
    hw = h * w
    edges_max = jnp.max(edges_f)
    edge_mask = edges_f >= edges_max * 0.1
    minlen = jnp.sum(edge_mask.astype(jnp.int32))
    # Fixed-size nonzero (fill 0; filled slots never sampled since idx < minlen).
    edges_loc = jnp.nonzero(edge_mask, size=hw, fill_value=0)[0]

    k1, k2 = jax.random.split(key)
    # TODO(synk): PyTorch uses sample_num == minlen (data-dependent #edge px);
    # fixed to h*w here to keep shapes static (same expectation under the mean).
    index_anchors = jax.random.randint(k1, (sample_num,), 0,
                                       jnp.maximum(minlen, 1))
    anchor_idx = edges_loc[index_anchors]

    abs_cos = abscos_f[anchor_idx]       # |cos(theta_anchor)| (precomputed)
    abs_sin = abssin_f[anchor_idx]       # |sin(theta_anchor)|

    # ind2sub (intended integer division).
    row_anchors = anchor_idx // w
    col_anchors = anchor_idx - row_anchors * w

    distance = jax.random.randint(k2, (4, sample_num), 2, 31).astype(jnp.float32)
    pos_or_neg = jnp.concatenate(
        [-jnp.ones((2, sample_num), jnp.float32),
         jnp.ones((2, sample_num), jnp.float32)], axis=0)
    distance = distance * pos_or_neg

    col = col_anchors[None, :] + jnp.round(distance * abs_cos[None, :]).astype(jnp.int32)
    row = row_anchors[None, :] + jnp.round(distance * abs_sin[None, :]).astype(jnp.int32)
    col = jnp.clip(col, 0, w - 1)
    row = jnp.clip(row, 0, h - 1)

    idx = row * w + col                  # sub2ind, (4, sample_num)
    A = jnp.concatenate([idx[0], idx[1], idx[2]])
    B = jnp.concatenate([idx[1], idx[2], idx[3]])

    g = lambda arr, I: jnp.take(arr, I, axis=0)
    return (g(inputs_f, A), g(inputs_f, B),
            g(targets_f, A), g(targets_f, B),
            g(masks_f, A), g(masks_f, B))


def depth_guided_ranking_loss(inputs, targets, images, key,
                              sigma=SIGMA, alpha=ALPHA, mask_value=MASK_VALUE):
    """inputs/targets: (N, 1, H, W); images: (N, C, H, W) — NCHW like PyTorch."""
    masks = (targets > mask_value).astype(jnp.float32)
    n, c, h, w = targets.shape

    # getEdge uses channel 0 when C==3 (and requires C==1 otherwise).
    img0 = images[:, 0, :, :].astype(jnp.float32)
    edges, abs_cos, abs_sin = get_edge(img0)

    inputs_f = inputs.reshape(n, -1).astype(jnp.float32)
    targets_f = targets.reshape(n, -1).astype(jnp.float32)
    masks_f = masks.reshape(n, -1)
    edges_f = edges.reshape(n, -1)
    abscos_f = abs_cos.reshape(n, -1)
    abssin_f = abs_sin.reshape(n, -1)

    sample_num = h * w
    keys = jax.random.split(key, n)
    sample = jax.vmap(functools.partial(edge_guided_sampling,
                                        h=h, w=w, sample_num=sample_num))
    iA, iB, tA, tB, mA, mB = sample(keys, inputs_f, targets_f, masks_f,
                                    edges_f, abscos_f, abssin_f)   # (N, 3*h*w)

    per_batch = _pair_loss(iA, iB, tA, tB, mA, mB, sigma, alpha)
    return (jnp.sum(per_batch) / n).astype(jnp.float32)


if __name__ == "__main__":
    key = jax.random.PRNGKey(0)
    k_img, k_tgt, k_in, k_samp = jax.random.split(key, 4)

    N, C, H, W = 2, 3, 16, 16
    images = jax.random.uniform(k_img, (N, C, H, W), jnp.float32)
    targets = jax.random.uniform(k_tgt, (N, 1, H, W), jnp.float32) + 0.1
    inputs = jax.random.uniform(k_in, (N, 1, H, W), jnp.float32) + 0.1

    loss_fn = jax.jit(depth_guided_ranking_loss)
    loss = loss_fn(inputs, targets, images, k_samp)
    loss = jax.block_until_ready(loss)
    assert jnp.isfinite(loss), "loss is not finite"
    print("KERNEL_OK")
</pallas_src>

<mosaic_0001>
module attributes {stable_mosaic.version = 11 : i64} {
  func.func private @main(%arg0: i32) attributes {dimension_semantics = [#tpu.dimension_semantics<core_parallel>], iteration_bounds = array<i64: 2>, tpu.core_type = #tpu.core_type<sc_scalar_subcore>, window_params = []} {
    return
  }
}

module attributes {stable_mosaic.version = 11 : i64} {
  func.func private @main(%arg0: i32) attributes {dimension_semantics = [#tpu.dimension_semantics<core_parallel>], iteration_bounds = array<i64: 2>, tpu.core_type = #tpu.core_type<sc_scalar_subcore>, window_params = []} {
    return
  }
}

module attributes {stable_mosaic.version = 11 : i64} {
  func.func @_edge_kernel(%arg0: i32, %arg1: memref<1x16x16xf32, #tpu.memory_space<vmem>>, %arg2: memref<1x16x16xf32, #tpu.memory_space<vmem>>, %arg3: memref<1x16x16xf32, #tpu.memory_space<vmem>>, %arg4: memref<1x16x16xf32, #tpu.memory_space<vmem>>) attributes {dimension_semantics = [#tpu.dimension_semantics<parallel>], iteration_bounds = array<i64: 2>, scalar_prefetch = 0 : i64, scratch_operands = 0 : i64, tpu.core_type = #tpu.core_type<tc>, window_params = [{transform_indices = @transform_0, window_bounds = array<i64: 1, 16, 16>}, {transform_indices = @transform_1, window_bounds = array<i64: 1, 16, 16>}, {transform_indices = @transform_2, window_bounds = array<i64: 1, 16, 16>}, {transform_indices = @transform_3, window_bounds = array<i64: 1, 16, 16>}]} {
    %0 = tpu.iota {dimensions = array<i32: 0>} : vector<16x16xi32>
    %1 = tpu.iota {dimensions = array<i32: 1>} : vector<16x16xi32>
    %c1_i32 = arith.constant 1 : i32
    %2 = vector.broadcast %c1_i32 : i32 to vector<16x16xi32>
    %3 = arith.cmpi sge, %0, %2 : vector<16x16xi32>
    %c14_i32 = arith.constant 14 : i32
    %4 = vector.broadcast %c14_i32 : i32 to vector<16x16xi32>
    %5 = arith.cmpi sle, %0, %4 : vector<16x16xi32>
    %6 = arith.andi %3, %5 : vector<16x16xi1>
    %c1_i32_0 = arith.constant 1 : i32
    %7 = vector.broadcast %c1_i32_0 : i32 to vector<16x16xi32>
    %8 = arith.cmpi sge, %1, %7 : vector<16x16xi32>
    %9 = arith.andi %6, %8 : vector<16x16xi1>
    %c14_i32_1 = arith.constant 14 : i32
    %10 = vector.broadcast %c14_i32_1 : i32 to vector<16x16xi32>
    %11 = arith.cmpi sle, %1, %10 : vector<16x16xi32>
    %12 = arith.andi %9, %11 : vector<16x16xi1>
    %c0 = arith.constant 0 : index
    %c0_2 = arith.constant 0 : index
    %c0_3 = arith.constant 0 : index
    %13 = vector.load %arg1[%c0, %c0_2, %c0_3] : memref<1x16x16xf32, #tpu.memory_space<vmem>>, vector<1x16x16xf32>
    %14 = vector.shape_cast %13 : vector<1x16x16xf32> to vector<16x16xf32>
    %c1_i32_4 = arith.constant 1 : i32
    %15 = tpu.dynamic_rotate %14 by %c1_i32_4 dim 1 : vector<16x16xf32>, i32 -> vector<16x16xf32>
    %c15_i32 = arith.constant 15 : i32
    %16 = tpu.dynamic_rotate %14 by %c15_i32 dim 1 : vector<16x16xf32>, i32 -> vector<16x16xf32>
    %17 = arith.subf %16, %15 : vector<16x16xf32>
    %cst = arith.constant 2.000000e+00 : f32
    %18 = vector.broadcast %cst : f32 to vector<16x16xf32>
    %19 = arith.mulf %18, %14 : vector<16x16xf32>
    %20 = arith.addf %15, %19 : vector<16x16xf32>
    %21 = arith.addf %20, %16 : vector<16x16xf32>
    %c1_i32_5 = arith.constant 1 : i32
    %22 = tpu.dynamic_rotate %17 by %c1_i32_5 dim 0 : vector<16x16xf32>, i32 -> vector<16x16xf32>
    %cst_6 = arith.constant 2.000000e+00 : f32
    %23 = vector.broadcast %cst_6 : f32 to vector<16x16xf32>
    %24 = arith.mulf %23, %17 : vector<16x16xf32>
    %25 = arith.addf %22, %24 : vector<16x16xf32>
    %c15_i32_7 = arith.constant 15 : i32
    %26 = tpu.dynamic_rotate %17 by %c15_i32_7 dim 0 : vector<16x16xf32>, i32 -> vector<16x16xf32>
    %27 = arith.addf %25, %26 : vector<16x16xf32>
    %c1_i32_8 = arith.constant 1 : i32
    %28 = tpu.dynamic_rotate %21 by %c1_i32_8 dim 0 : vector<16x16xf32>, i32 -> vector<16x16xf32>
    %c15_i32_9 = arith.constant 15 : i32
    %29 = tpu.dynamic_rotate %21 by %c15_i32_9 dim 0 : vector<16x16xf32>, i32 -> vector<16x16xf32>
    %30 = arith.subf %28, %29 : vector<16x16xf32>
    %cst_10 = arith.constant 0.000000e+00 : f32
    %31 = vector.broadcast %cst_10 : f32 to vector<16x16xf32>
    %32 = arith.select %12, %27, %31 : vector<16x16xi1>, vector<16x16xf32>
    %cst_11 = arith.constant 0.000000e+00 : f32
    %33 = vector.broadcast %cst_11 : f32 to vector<16x16xf32>
    %34 = arith.select %12, %30, %33 : vector<16x16xi1>, vector<16x16xf32>
    %35 = arith.mulf %32, %32 : vector<16x16xf32>
    %36 = arith.mulf %34, %34 : vector<16x16xf32>
    %37 = arith.addf %35, %36 : vector<16x16xf32>
    %38 = math.sqrt %37 : vector<16x16xf32>
    %cst_12 = arith.constant 1.000000e-30 : f32
    %39 = vector.broadcast %cst_12 : f32 to vector<16x16xf32>
    %40 = arith.maximumf %38, %39 : vector<16x16xf32>
    %cst_13 = arith.constant 1.000000e+00 : f32
    %41 = vector.broadcast %cst_13 : f32 to vector<16x16xf32>
    %42 = arith.divf %41, %40 : vector<16x16xf32>
    %cst_14 = arith.constant 0.000000e+00 : f32
    %43 = vector.broadcast %cst_14 : f32 to vector<16x16xf32>
    %44 = arith.cmpf ogt, %38, %43 : vector<16x16xf32>
    %c0_15 = arith.constant 0 : index
    %c0_16 = arith.constant 0 : index
    %c0_17 = arith.constant 0 : index
    %45 = vector.load %arg2[%c0_15, %c0_16, %c0_17] : memref<1x16x16xf32, #tpu.memory_space<vmem>>, vector<1x16x16xf32>
    %46 = vector.shape_cast %45 : vector<1x16x16xf32> to vector<16x16xf32>
    %47 = vector.shape_cast %38 : vector<16x16xf32> to vector<1x16x16xf32>
    tpu.vector_store %arg2[%c0_15, %c0_16, %c0_17], %47 {strides = array<i32>} : memref<1x16x16xf32, #tpu.memory_space<vmem>>, vector<1x16x16xf32>,
    %48 = math.absf %32 : vector<16x16xf32>
    %49 = arith.mulf %48, %42 : vector<16x16xf32>
    %cst_18 = arith.constant 1.000000e+00 : f32
    %50 = vector.broadcast %cst_18 : f32 to vector<16x16xf32>
    %51 = arith.select %44, %49, %50 : vector<16x16xi1>, vector<16x16xf32>
    %c0_19 = arith.constant 0 : index
    %c0_20 = arith.constant 0 : index
    %c0_21 = arith.constant 0 : index
    %52 = vector.load %arg3[%c0_19, %c0_20, %c0_21] : memref<1x16x16xf32, #tpu.memory_space<vmem>>, vector<1x16x16xf32>
    %53 = vector.shape_cast %52 : vector<1x16x16xf32> to vector<16x16xf32>
    %54 = vector.shape_cast %51 : vector<16x16xf32> to vector<1x16x16xf32>
    tpu.vector_store %arg3[%c0_19, %c0_20, %c0_21], %54 {strides = array<i32>} : memref<1x16x16xf32, #tpu.memory_space<vmem>>, vector<1x16x16xf32>,
    %55 = math.absf %34 : vector<16x16xf32>
    %56 = arith.mulf %55, %42 : vector<16x16xf32>
    %cst_22 = arith.constant 0.000000e+00 : f32
    %57 = vector.broadcast %cst_22 : f32 to vector<16x16xf32>
    %58 = arith.select %44, %56, %57 : vector<16x16xi1>, vector<16x16xf32>
    %c0_23 = arith.constant 0 : index
    %c0_24 = arith.constant 0 : index
    %c0_25 = arith.constant 0 : index
    %59 = vector.load %arg4[%c0_23, %c0_24, %c0_25] : memref<1x16x16xf32, #tpu.memory_space<vmem>>, vector<1x16x16xf32>
    %60 = vector.shape_cast %59 : vector<1x16x16xf32> to vector<16x16xf32>
    %61 = vector.shape_cast %58 : vector<16x16xf32> to vector<1x16x16xf32>
    tpu.vector_store %arg4[%c0_23, %c0_24, %c0_25], %61 {strides = array<i32>} : memref<1x16x16xf32, #tpu.memory_space<vmem>>, vector<1x16x16xf32>,
    return
  }
  func.func @transform_0(%arg0: i32) -> (i32, i32, i32) {
    %c0_i32 = arith.constant 0 : i32
    %c0_i32_0 = arith.constant 0 : i32
    %c0_i32_1 = arith.constant 0 : i32
    return %arg0, %c0_i32, %c0_i32_0 : i32, i32, i32
  }
  func.func @transform_1(%arg0: i32) -> (i32, i32, i32) {
    %c0_i32 = arith.constant 0 : i32
    %c0_i32_0 = arith.constant 0 : i32
    %c0_i32_1 = arith.constant 0 : i32
    return %arg0, %c0_i32, %c0_i32_0 : i32, i32, i32
  }
  func.func @transform_2(%arg0: i32) -> (i32, i32, i32) {
    %c0_i32 = arith.constant 0 : i32
    %c0_i32_0 = arith.constant 0 : i32
    %c0_i32_1 = arith.constant 0 : i32
    return %arg0, %c0_i32, %c0_i32_0 : i32, i32, i32
  }
  func.func @transform_3(%arg0: i32) -> (i32, i32, i32) {
    %c0_i32 = arith.constant 0 : i32
    %c0_i32_0 = arith.constant 0 : i32
    %c0_i32_1 = arith.constant 0 : i32
    return %arg0, %c0_i32, %c0_i32_0 : i32, i32, i32
  }
}

module attributes {stable_mosaic.version = 11 : i64} {
  func.func @_pair_loss_kernel(%arg0: i32, %arg1: i32, %arg2: memref<1x1x768xf32, #tpu.memory_space<vmem>>, %arg3: memref<1x1x768xf32, #tpu.memory_space<vmem>>, %arg4: memref<1x1x768xf32, #tpu.memory_space<vmem>>, %arg5: memref<1x1x768xf32, #tpu.memory_space<vmem>>, %arg6: memref<1x1x768xf32, #tpu.memory_space<vmem>>, %arg7: memref<1x1x768xf32, #tpu.memory_space<vmem>>, %arg8: memref<1x1x128xf32, #tpu.memory_space<vmem>>, %arg9: memref<1x1x128xf32, #tpu.memory_space<vmem>>) attributes {dimension_semantics = [#tpu.dimension_semantics<parallel>, #tpu.dimension_semantics<arbitrary>], iteration_bounds = array<i64: 2, 1>, scalar_prefetch = 0 : i64, scratch_operands = 1 : i64, tpu.core_type = #tpu.core_type<tc>, window_params = [{transform_indices = @transform_0, window_bounds = array<i64: 1, 1, 768>}, {transform_indices = @transform_1, window_bounds = array<i64: 1, 1, 768>}, {transform_indices = @transform_2, window_bounds = array<i64: 1, 1, 768>}, {transform_indices = @transform_3, window_bounds = array<i64: 1, 1, 768>}, {transform_indices = @transform_4, window_bounds = array<i64: 1, 1, 768>}, {transform_indices = @transform_5, window_bounds = array<i64: 1, 1, 768>}, {transform_indices = @transform_6, window_bounds = array<i64: 1, 1, 128>}]} {
    %c0_i32 = arith.constant 0 : i32
    %0 = arith.cmpi eq, %arg1, %c0_i32 : i32
    %1 = arith.extui %0 : i1 to i32
    %c0_i32_0 = arith.constant 0 : i32
    %2 = arith.cmpi ne, %1, %c0_i32_0 : i32
    scf.if %2 {
      %cst_40 = arith.constant 0.000000e+00 : f32
      %64 = vector.broadcast %cst_40 : f32 to vector<1x1x128xf32>
      %c0_41 = arith.constant 0 : index
      %c0_42 = arith.constant 0 : index
      %c0_43 = arith.constant 0 : index
      %65 = vector.load %arg9[%c0_41, %c0_42, %c0_43] : memref<1x1x128xf32, #tpu.memory_space<vmem>>, vector<1x1x128xf32>
      tpu.vector_store %arg9[%c0_41, %c0_42, %c0_43], %64 {strides = array<i32>} : memref<1x1x128xf32, #tpu.memory_space<vmem>>, vector<1x1x128xf32>,
    } else {
    }
    %c0 = arith.constant 0 : index
    %c0_1 = arith.constant 0 : index
    %c0_2 = arith.constant 0 : index
    %3 = vector.load %arg2[%c0, %c0_1, %c0_2] : memref<1x1x768xf32, #tpu.memory_space<vmem>>, vector<1x1x768xf32>
    %c0_3 = arith.constant 0 : index
    %c0_4 = arith.constant 0 : index
    %c0_5 = arith.constant 0 : index
    %4 = vector.load %arg3[%c0_3, %c0_4, %c0_5] : memref<1x1x768xf32, #tpu.memory_space<vmem>>, vector<1x1x768xf32>
    %c0_6 = arith.constant 0 : index
    %c0_7 = arith.constant 0 : index
    %c0_8 = arith.constant 0 : index
    %5 = vector.load %arg4[%c0_6, %c0_7, %c0_8] : memref<1x1x768xf32, #tpu.memory_space<vmem>>, vector<1x1x768xf32>
    %c0_9 = arith.constant 0 : index
    %c0_10 = arith.constant 0 : index
    %c0_11 = arith.constant 0 : index
    %6 = vector.load %arg5[%c0_9, %c0_10, %c0_11] : memref<1x1x768xf32, #tpu.memory_space<vmem>>, vector<1x1x768xf32>
    %c0_12 = arith.constant 0 : index
    %c0_13 = arith.constant 0 : index
    %c0_14 = arith.constant 0 : index
    %7 = vector.load %arg6[%c0_12, %c0_13, %c0_14] : memref<1x1x768xf32, #tpu.memory_space<vmem>>, vector<1x1x768xf32>
    %c0_15 = arith.constant 0 : index
    %c0_16 = arith.constant 0 : index
    %c0_17 = arith.constant 0 : index
    %8 = vector.load %arg7[%c0_15, %c0_16, %c0_17] : memref<1x1x768xf32, #tpu.memory_space<vmem>>, vector<1x1x768xf32>
    %9 = arith.mulf %7, %8 : vector<1x1x768xf32>
    %cst = arith.constant 9.99999997E-7 : f32
    %10 = vector.broadcast %cst : f32 to vector<1x1x768xf32>
    %11 = arith.addf %5, %10 : vector<1x1x768xf32>
    %cst_18 = arith.constant 9.99999997E-7 : f32
    %12 = vector.broadcast %cst_18 : f32 to vector<1x1x768xf32>
    %13 = arith.addf %6, %12 : vector<1x1x768xf32>
    %14 = arith.divf %11, %13 : vector<1x1x768xf32>
    %cst_19 = arith.constant 1.030000e+00 : f32
    %15 = vector.broadcast %cst_19 : f32 to vector<1x1x768xf32>
    %16 = arith.cmpf olt, %14, %15 : vector<1x1x768xf32>
    %cst_20 = arith.constant 0.970873773 : f32
    %17 = vector.broadcast %cst_20 : f32 to vector<1x1x768xf32>
    %18 = arith.cmpf ogt, %14, %17 : vector<1x1x768xf32>
    %19 = arith.andi %16, %18 : vector<1x1x768xi1>
    %20 = arith.extui %19 : vector<1x1x768xi1> to vector<1x1x768xi32>
    %21 = arith.sitofp %20 : vector<1x1x768xi32> to vector<1x1x768xf32>
    %cst_21 = arith.constant 1.030000e+00 : f32
    %22 = vector.broadcast %cst_21 : f32 to vector<1x1x768xf32>
    %23 = arith.cmpf oge, %14, %22 : vector<1x1x768xf32>
    %cst_22 = arith.constant 0.970873773 : f32
    %24 = vector.broadcast %cst_22 : f32 to vector<1x1x768xf32>
    %25 = arith.cmpf ole, %14, %24 : vector<1x1x768xf32>
    %cst_23 = arith.constant -1.000000e+00 : f32
    %cst_24 = arith.constant 0.000000e+00 : f32
    %26 = vector.broadcast %cst_23 : f32 to vector<1x1x768xf32>
    %27 = vector.broadcast %cst_24 : f32 to vector<1x1x768xf32>
    %28 = arith.select %25, %26, %27 : vector<1x1x768xi1>, vector<1x1x768xf32>
    %cst_25 = arith.constant 1.000000e+00 : f32
    %29 = vector.broadcast %cst_25 : f32 to vector<1x1x768xf32>
    %30 = arith.select %23, %29, %28 : vector<1x1x768xi1>, vector<1x1x768xf32>
    %31 = arith.subf %3, %4 : vector<1x1x768xf32>
    %32 = arith.mulf %31, %31 : vector<1x1x768xf32>
    %33 = arith.mulf %32, %21 : vector<1x1x768xf32>
    %34 = arith.subf %4, %3 : vector<1x1x768xf32>
    %35 = arith.mulf %34, %30 : vector<1x1x768xf32>
    %cst_26 = arith.constant 0.000000e+00 : f32
    %36 = vector.broadcast %cst_26 : f32 to vector<1x1x768xf32>
    %37 = arith.maximumf %35, %36 : vector<1x1x768xf32>
    %38 = math.absf %35 : vector<1x1x768xf32>
    %cst_27 = arith.constant 0.000000e+00 : f32
    %39 = vector.broadcast %cst_27 : f32 to vector<1x1x768xf32>
    %40 = arith.subf %39, %38 : vector<1x1x768xf32>
    %41 = math.exp %40 : vector<1x1x768xf32>
    %cst_28 = arith.constant 1.000000e+00 : f32
    %42 = vector.broadcast %cst_28 : f32 to vector<1x1x768xf32>
    %43 = arith.addf %42, %41 : vector<1x1x768xf32>
    %44 = math.log %43 : vector<1x1x768xf32>
    %45 = arith.addf %37, %44 : vector<1x1x768xf32>
    %cst_29 = arith.constant 1.000000e+00 : f32
    %46 = vector.broadcast %cst_29 : f32 to vector<1x1x768xf32>
    %47 = arith.subf %46, %21 : vector<1x1x768xf32>
    %48 = arith.mulf %45, %47 : vector<1x1x768xf32>
    %cst_30 = arith.constant 1.000000e+00 : f32
    %49 = vector.broadcast %cst_30 : f32 to vector<1x1x768xf32>
    %50 = arith.mulf %49, %33 : vector<1x1x768xf32>
    %51 = arith.addf %50, %48 : vector<1x1x768xf32>
    %52 = arith.mulf %51, %9 : vector<1x1x768xf32>
    %53 = vector.shape_cast %52 : vector<1x1x768xf32> to vector<1x1x1x768xf32>
    %cst_31 = arith.constant dense<0.000000e+00> : vector<1xf32>
    %54 = vector.multi_reduction <add>, %53, %cst_31 [1, 2, 3] : vector<1x1x1x768xf32> to vector<1xf32>
    %55 = vector.shape_cast %54 : vector<1xf32> to vector<1x1x1x1xf32>
    %56 = vector.extract %55[0, 0, 0, 0] : f32 from vector<1x1x1x1xf32>
    %c0_32 = arith.constant 0 : index
    %c0_33 = arith.constant 0 : index
    %c0_34 = arith.constant 0 : index
    %57 = vector.load %arg9[%c0_32, %c0_33, %c0_34] : memref<1x1x128xf32, #tpu.memory_space<vmem>>, vector<1x1x128xf32>
    %58 = vector.broadcast %56 : f32 to vector<1x1x128xf32>
    %59 = arith.addf %57, %58 : vector<1x1x128xf32>
    %c0_35 = arith.constant 0 : index
    %c0_36 = arith.constant 0 : index
    %c0_37 = arith.constant 0 : index
    %60 = vector.load %arg9[%c0_35, %c0_36, %c0_37] : memref<1x1x128xf32, #tpu.memory_space<vmem>>, vector<1x1x128xf32>
    tpu.vector_store %arg9[%c0_35, %c0_36, %c0_37], %59 {strides = array<i32>} : memref<1x1x128xf32, #tpu.memory_space<vmem>>, vector<1x1x128xf32>,
    %c0_i32_38 = arith.constant 0 : i32
    %61 = arith.cmpi eq, %arg1, %c0_i32_38 : i32
    %62 = arith.extui %61 : i1 to i32
    %c0_i32_39 = arith.constant 0 : i32
    %63 = arith.cmpi ne, %62, %c0_i32_39 : i32
    scf.if %63 {
      %c0_40 = arith.constant 0 : index
      %c0_41 = arith.constant 0 : index
      %c0_42 = arith.constant 0 : index
      %64 = vector.load %arg9[%c0_40, %c0_41, %c0_42] : memref<1x1x128xf32, #tpu.memory_space<vmem>>, vector<1x1x128xf32>
      %cst_43 = arith.constant 0.00130208337 : f32
      %65 = vector.broadcast %cst_43 : f32 to vector<1x1x128xf32>
      %66 = arith.mulf %64, %65 : vector<1x1x128xf32>
      %c0_44 = arith.constant 0 : index
      %c0_45 = arith.constant 0 : index
      %c0_46 = arith.constant 0 : index
      %67 = vector.load %arg8[%c0_44, %c0_45, %c0_46] : memref<1x1x128xf32, #tpu.memory_space<vmem>>, vector<1x1x128xf32>
      tpu.vector_store %arg8[%c0_44, %c0_45, %c0_46], %66 {strides = array<i32>} : memref<1x1x128xf32, #tpu.memory_space<vmem>>, vector<1x1x128xf32>,
    } else {
    }
    return
  }
  func.func @transform_0(%arg0: i32, %arg1: i32) -> (i32, i32, i32) {
    %c0_i32 = arith.constant 0 : i32
    %c0_i32_0 = arith.constant 0 : i32
    return %arg0, %c0_i32, %arg1 : i32, i32, i32
  }
  func.func @transform_1(%arg0: i32, %arg1: i32) -> (i32, i32, i32) {
    %c0_i32 = arith.constant 0 : i32
    %c0_i32_0 = arith.constant 0 : i32
    return %arg0, %c0_i32, %arg1 : i32, i32, i32
  }
  func.func @transform_2(%arg0: i32, %arg1: i32) -> (i32, i32, i32) {
    %c0_i32 = arith.constant 0 : i32
    %c0_i32_0 = arith.constant 0 : i32
    return %arg0, %c0_i32, %arg1 : i32, i32, i32
  }
  func.func @transform_3(%arg0: i32, %arg1: i32) -> (i32, i32, i32) {
    %c0_i32 = arith.constant 0 : i32
    %c0_i32_0 = arith.constant 0 : i32
    return %arg0, %c0_i32, %arg1 : i32, i32, i32
  }
  func.func @transform_4(%arg0: i32, %arg1: i32) -> (i32, i32, i32) {
    %c0_i32 = arith.constant 0 : i32
    %c0_i32_0 = arith.constant 0 : i32
    return %arg0, %c0_i32, %arg1 : i32, i32, i32
  }
  func.func @transform_5(%arg0: i32, %arg1: i32) -> (i32, i32, i32) {
    %c0_i32 = arith.constant 0 : i32
    %c0_i32_0 = arith.constant 0 : i32
    return %arg0, %c0_i32, %arg1 : i32, i32, i32
  }
  func.func @transform_6(%arg0: i32, %arg1: i32) -> (i32, i32, i32) {
    %c0_i32 = arith.constant 0 : i32
    %c0_i32_0 = arith.constant 0 : i32
    %c0_i32_1 = arith.constant 0 : i32
    return %arg0, %c0_i32, %c0_i32_0 : i32, i32, i32
  }
}

</mosaic_0001>

<llo_original>
// kernel: depth_guided_ranking_loss.4
$region0: #{depth_guided_ranking_loss.4}
  #allocation0 [shape = 'u32[]', space=smem, size = 0x4, offset = 0x4, fixed_abs, tag = 'smem constant byte address 0x4 - core index']
  #allocation1 [shape = 'u32[144,128]{1,0:T(1,128)}', space=vmem, size = 0x12000, scoped, tag = 'internal scratch']
  %s0 = inlined_call_operand.vmem [shape: f32[2,16,16], index: 0, kind: input, shape index: {}]
  %s1 = inlined_call_operand.vmem [shape: f32[2,16,16], index: 1, kind: output, shape index: {0}]
  %s2 = inlined_call_operand.vmem [shape: f32[2,16,16], index: 2, kind: output, shape index: {1}]
  %s3 = inlined_call_operand.vmem [shape: f32[2,16,16], index: 3, kind: output, shape index: {2}]
  %4 = xla_tuple %s1, %s2, %s3
  %s5 = sld [smem:[#allocation0]]
  $region53: #{depth_guided_ranking_loss.4} parent=0
    _
  %s7 = ssub.s32 1, %s5
  %s8 = scalar_select 0, %s7, %s5
  loop: start=0, step=1, limit=4
  $region2: #{depth_guided_ranking_loss.4} parent=0 // loop_pre_header
    _
  $region3: #{depth_guided_ranking_loss.4} parent=0 // loop_header
    %s10 = sphi 0, %s14
    %p11 = scmp.ge.s32.totalorder %s10, 4
    %s20 = sphi 0, %s22
    %s23 = sphi 0, %s20
    %s24 = sphi 0, %s23
    %s40 = sphi 0, %s24
    %s46 = sphi 0, %s48
    %s49 = sphi 0, %s46
    %s50 = sphi 0, %s49
    %s66 = sphi 0, %s50
    %s72 = sphi 0, %s74
    %s75 = sphi 0, %s72
    %s76 = sphi 0, %s75
    %s92 = sphi 0, %s76
    %s98 = sphi 0, %s100
    %s101 = sphi 0, %s98
    %s102 = sphi 0, %s101
    %s118 = sphi 0, %s102
  $region4: #{depth_guided_ranking_loss.4} parent=0 // loop_header_branch
    %13 = sbr.rel (%p11) target = $region8
  $region5: #{depth_guided_ranking_loss.4} parent=0 // loop_body
    %s15 = ssub.s32 %s10, 1
    %s16 = ssub.s32 %s10, 2
    %s17 = sadd.s32 %s10, 1
    %s18 = ssub.s32 %s10, %s17
    %p19 = scmp.eq.s32.totalorder %s18, 0
    %s21 = sadd.s32 %s20, 1
    %s22 = scalar_select %p19, %s20, %s21
    %p25 = pneg %p19
    %p26 = scmp.eq.s32.totalorder %s10, 1
    %p27 = por %p25, %p26
    %p28 = scmp.ne.s32.totalorder %s20, %s23
    %p29 = scmp.eq.s32.totalorder %s10, 0
    %p30 = por %p28, %p29
    %p31 = scmp.ne.s32.totalorder %s20, %s23
    %p32 = scmp.eq.s32.totalorder %s15, 1
    %p33 = por %p31, %p32
    %p34 = scmp.ne.s32.totalorder %s23, %s24
    %p35 = scmp.eq.s32.totalorder %s15, 0
    %p36 = por %p34, %p35
    %p37 = scmp.ne.s32.totalorder %s23, %s24
    %p38 = scmp.eq.s32.totalorder %s16, 1
    %p39 = por %p37, %p38
    %p41 = scmp.ne.s32.totalorder %s24, %s40
    %p42 = scmp.eq.s32.totalorder %s16, 0
    %p43 = por %p41, %p42
    %s44 = ssub.s32 %s10, %s17
    %p45 = scmp.eq.s32.totalorder %s44, 0
    %s47 = sadd.s32 %s46, 1
    %s48 = scalar_select %p45, %s46, %s47
    %p51 = pneg %p45
    %p52 = scmp.eq.s32.totalorder %s10, 1
    %p53 = por %p51, %p52
    %p54 = scmp.ne.s32.totalorder %s46, %s49
    %p55 = scmp.eq.s32.totalorder %s10, 0
    %p56 = por %p54, %p55
    %p57 = scmp.ne.s32.totalorder %s46, %s49
    %p58 = scmp.eq.s32.totalorder %s15, 1
    %p59 = por %p57, %p58
    %p60 = scmp.ne.s32.totalorder %s49, %s50
    %p61 = scmp.eq.s32.totalorder %s15, 0
    %p62 = por %p60, %p61
    %p63 = scmp.ne.s32.totalorder %s49, %s50
    %p64 = scmp.eq.s32.totalorder %s16, 1
    %p65 = por %p63, %p64
    %p67 = scmp.ne.s32.totalorder %s50, %s66
    %p68 = scmp.eq.s32.totalorder %s16, 0
    %p69 = por %p67, %p68
    %s70 = ssub.s32 %s10, %s17
    %p71 = scmp.eq.s32.totalorder %s70, 0
    %s73 = sadd.s32 %s72, 1
    %s74 = scalar_select %p71, %s72, %s73
    %p77 = pneg %p71
    %p78 = scmp.eq.s32.totalorder %s10, 1
    %p79 = por %p77, %p78
    %p80 = scmp.ne.s32.totalorder %s72, %s75
    %p81 = scmp.eq.s32.totalorder %s10, 0
    %p82 = por %p80, %p81
    %p83 = scmp.ne.s32.totalorder %s72, %s75
    %p84 = scmp.eq.s32.totalorder %s15, 1
    %p85 = por %p83, %p84
    %p86 = scmp.ne.s32.totalorder %s75, %s76
    %p87 = scmp.eq.s32.totalorder %s15, 0
    %p88 = por %p86, %p87
    %p89 = scmp.ne.s32.totalorder %s75, %s76
    %p90 = scmp.eq.s32.totalorder %s16, 1
    %p91 = por %p89, %p90
    %p93 = scmp.ne.s32.totalorder %s76, %s92
    %p94 = scmp.eq.s32.totalorder %s16, 0
    %p95 = por %p93, %p94
    %s96 = ssub.s32 %s10, %s17
    %p97 = scmp.eq.s32.totalorder %s96, 0
    %s99 = sadd.s32 %s98, 1
    %s100 = scalar_select %p97, %s98, %s99
    %p103 = pneg %p97
    %p104 = scmp.eq.s32.totalorder %s10, 1
    %p105 = por %p103, %p104
    %p106 = scmp.ne.s32.totalorder %s98, %s101
    %p107 = scmp.eq.s32.totalorder %s10, 0
    %p108 = por %p106, %p107
    %p109 = scmp.ne.s32.totalorder %s98, %s101
    %p110 = scmp.eq.s32.totalorder %s15, 1
    %p111 = por %p109, %p110
    %p112 = scmp.ne.s32.totalorder %s101, %s102
    %p113 = scmp.eq.s32.totalorder %s15, 0
    %p114 = por %p112, %p113
    %p115 = scmp.ne.s32.totalorder %s101, %s102
    %p116 = scmp.eq.s32.totalorder %s16, 1
    %p117 = por %p115, %p116
    %p119 = scmp.ne.s32.totalorder %s102, %s118
    %p120 = scmp.eq.s32.totalorder %s16, 0
    %p121 = por %p119, %p120
    %p122 = scmp.le.s32.totalorder 1, %s10
    %p123 = scmp.lt.s32.totalorder %s10, 3
    %p124 = pnand %p122, %p123
    %p125 = pneg %p124
    // Predicated region
    $region9: #{depth_guided_ranking_loss.4} parent=5 // pred_check
      _
    $region10: #{depth_guided_ranking_loss.4} parent=5 // pred_check_branch
      %127 = sbr.rel (%p124) target = $region12
    $region11: #{depth_guided_ranking_loss.4} parent=5 // pred_region
      %s128 = ssub.s32 %s10, 1
    $region12: #{depth_guided_ranking_loss.4} parent=5 // pred_fallthru
      _
    %p129 = scmp.lt.s32.totalorder %s10, 2
    // Predicated region
    $region13: #{depth_guided_ranking_loss.4} parent=5 // pred_check
      %p130 = pneg %p129
    $region14: #{depth_guided_ranking_loss.4} parent=5 // pred_check_branch
      %132 = sbr.rel (%p130) target = $region16
    $region15: #{depth_guided_ranking_loss.4} parent=5 // pred_region
      // Predicated region
      $region17: #{depth_guided_ranking_loss.4} parent=15 // pred_check
        %p133 = pneg %p30
      $region18: #{depth_guided_ranking_loss.4} parent=15 // pred_check_branch
        %135 = sbr.rel (%p133) target = $region20
      $region19: #{depth_guided_ranking_loss.4} parent=15 // pred_region
        %p136 = scmp.lt.s32.totalorder %s10, 1
        %s137 = scalar_select %p136, %s10, 1
        %s138 = smul.addr %s137, 2
        %s139 = smul.addr %s138, 8
        %s140 = scalar_lea.vmem %s0, %s139
      $region20: #{depth_guided_ranking_loss.4} parent=15 // pred_fallthru
        _
    $region16: #{depth_guided_ranking_loss.4} parent=5 // pred_fallthru
      _
    %p141 = scmp.le.s32.totalorder 1, %s10
    %p142 = scmp.lt.s32.totalorder %s10, 3
    %p143 = pnand %p141, %p142
    %p144 = pneg %p143
    // Predicated region
    $region21: #{depth_guided_ranking_loss.4} parent=5 // pred_check
      _
    $region22: #{depth_guided_ranking_loss.4} parent=5 // pred_check_branch
      %146 = sbr.rel (%p143) target = $region24
    $region23: #{depth_guided_ranking_loss.4} parent=5 // pred_region
      %s147 = ssub.s32 %s10, 1
      %p148 = scmp.lt.s32.totalorder %s15, 1
      %s149 = scalar_select %p148, %s15, 1
      %s150 = smul.addr %s149, 2
      %s151 = smul.addr %s150, 8
      %s152 = scalar_lea.vmem %s0, %s151
      %p153 = pneg %p36
      %p154 = pneg %p33
      %p155 = pneg %p62
      %p156 = pneg %p59
      %p157 = scmp.lt.s32.totalorder %s15, 1
      %s158 = scalar_select %p157, %s15, 1
      %s159 = smul.addr %s158, 2
      %s160 = smul.addr %s159, 8
      %s161 = scalar_lea.vmem %s1, %s160
      %p162 = pneg %p88
      %p163 = pneg %p85
      %p164 = scmp.lt.s32.totalorder %s15, 1
      %s165 = scalar_select %p164, %s15, 1
      %s166 = smul.addr %s165, 2
      %s167 = smul.addr %s166, 8
      %s168 = scalar_lea.vmem %s2, %s167
      %p169 = pneg %p114
      %p170 = pneg %p111
      %p171 = scmp.lt.s32.totalorder %s15, 1
      %s172 = scalar_select %p171, %s15, 1
      %s173 = smul.addr %s172, 2
      %s174 = smul.addr %s173, 8
      %s175 = scalar_lea.vmem %s3, %s174
      %p176 = scmp.lt.s32.totalorder %s15, 1
      %s177 = scalar_select %p176, %s15, 1
      %s178 = smul.addr %s177, 2
      %s179 = smul.addr %s178, 8
      %s180 = scalar_lea.vmem %s0, %s179
      %p181 = scmp.lt.s32.totalorder %s15, 1
      %s182 = scalar_select %p181, %s15, 1
      %s183 = smul.addr %s182, 2
      %s184 = smul.addr %s183, 8
      %s185 = scalar_lea.vmem %s1, %s184
      %p186 = scmp.lt.s32.totalorder %s15, 1
      %s187 = scalar_select %p186, %s15, 1
      %s188 = smul.addr %s187, 2
      %s189 = smul.addr %s188, 8
      %s190 = scalar_lea.vmem %s2, %s189
      %p191 = scmp.lt.s32.totalorder %s15, 1
      %s192 = scalar_select %p191, %s15, 1
      %s193 = smul.addr %s192, 2
      %s194 = smul.addr %s193, 8
      %s195 = scalar_lea.vmem %s3, %s194
      %v196 = vlaneseq
      %v197 = vshrl.u32 %v196, 7
      %v198 = vadd.s32 %v197, 8
      %v199 = vlaneseq
      %v200 = vand.u32 %v199, 127
      %vm201 = vcmp.ge.s32.totalorder %v197, 1
      %vm202 = vcmp.ge.s32.totalorder %v198, 1
      %vm203 = vcmp.le.s32.totalorder %v197, 14
      %vm204 = vcmp.le.s32.totalorder %v198, 14
      %vm205 = vmand %vm201, %vm203
      %vm206 = vmand %vm202, %vm204
      %vm207 = vcmp.ge.s32.totalorder %v200, 1
      %vm208 = vmand %vm205, %vm207
      %vm209 = vmand %vm206, %vm207
      %vm210 = vcmp.le.s32.totalorder %v200, 14
      %vm211 = vmand %vm208, %vm210
      %vm212 = vmand %vm209, %vm210
      %v213 = vld [vmem:[%s180] sm:$0xff]
      %v214 = vld [vmem:[%s180 + $0x8] sm:$0xff]
      %vm215 = vcmask 1047680
      %216 = vrot.lane.b32.xlu0 %v213, 16
      %v217 = vpop.permute.xlu0 %216
      %v218 = vsel %vm215, %v217, %v213
      %219 = vrot.lane.b32.xlu0 %v214, 16
      %v220 = vpop.permute.xlu0 %219
      %v221 = vsel %vm215, %v220, %v214
      %222 = vrot.lane.b32.xlu0 %v218, 16
      %v223 = vpop.permute.xlu0 %222
      %224 = vrot.lane.b32.xlu0 %v221, 16
      %v225 = vpop.permute.xlu0 %224
      %v226 = vsel %vm215, %v223, %v213
      %v227 = vsel %vm215, %v225, %v214
      %230 = vrot.lane.b32.xlu0 %v226, 114
      %v231 = vpop.permute.xlu0 %230
      %232 = vrot.lane.b32.xlu0 %v227, 114
      %v233 = vpop.permute.xlu0 %232
      %v236 = vsub.f32 %v226, %v231
      %v237 = vsub.f32 %v227, %v233
      %v238 = vmul.f32 %v213, 2.0
      %v239 = vmul.f32 %v214, 2.0
      %242 = vrot.lane.b32.xlu0 %v238, 15
      %v243 = vpop.permute.xlu0 %242
      %244 = vrot.lane.b32.xlu0 %v239, 15
      %v245 = vpop.permute.xlu0 %244
      %v248 = vadd.f32 %v226, %v243
      %v249 = vadd.f32 %v227, %v245
      %250 = vrot.lane.b32.xlu0 %v226, 14
      %v251 = vpop.permute.xlu0 %250
      %252 = vrot.lane.b32.xlu0 %v227, 14
      %v253 = vpop.permute.xlu0 %252
      %v256 = vadd.f32 %v248, %v251
      %v257 = vadd.f32 %v249, %v253
      %260 = vrot.lane.b32.xlu0 %v236, 127
      %v261 = vpop.permute.xlu0 %260
      %262 = vrot.lane.b32.xlu0 %v237, 127
      %v263 = vpop.permute.xlu0 %262
      %v266 = vrot.slane %v261, 7
      %v267 = vrot.slane %v263, 7
      %vm268 = vcmp.lt.s32.totalorder %v197, 1
      %v269 = vsel %vm268, %v266, %v267
      %v270 = vsel %vm268, %v267, %v266
      %v271 = vmul.f32 %v236, 2.0
      %v272 = vmul.f32 %v237, 2.0
      %275 = vrot.lane.b32.xlu0 %v271, 127
      %v276 = vpop.permute.xlu0 %275
      %277 = vrot.lane.b32.xlu0 %v272, 127
      %v278 = vpop.permute.xlu0 %277
      %v281 = vadd.f32 %v270, %v276
      %v282 = vadd.f32 %v269, %v278
      %v283 = vrot.slane %v261, 1
      %v284 = vrot.slane %v263, 1
      %vm285 = vcmp.lt.s32.totalorder %v197, 7
      %v286 = vsel %vm285, %v283, %v284
      %v287 = vsel %vm285, %v284, %v283
      %v288 = vadd.f32 %v281, %v286
      %v289 = vadd.f32 %v282, %v287
      %292 = vrot.lane.b32.xlu0 %v256, 113
      %v293 = vpop.permute.xlu0 %292
      %294 = vrot.lane.b32.xlu0 %v257, 113
      %v295 = vpop.permute.xlu0 %294
      %v298 = vrot.slane %v293, 7
      %v299 = vrot.slane %v295, 7
      %v300 = vsel %vm268, %v298, %v299
      %v301 = vsel %vm268, %v299, %v298
      %v302 = vrot.slane %v293, 1
      %v303 = vrot.slane %v295, 1
      %v304 = vsel %vm285, %v302, %v303
      %v305 = vsel %vm285, %v303, %v302
      %v306 = vsub.f32 %v301, %v304
      %v307 = vsub.f32 %v300, %v305
      %v308 = vsel %vm211, %v288, 0.0
      %v309 = vsel %vm212, %v289, 0.0
      %v310 = vsel %vm211, %v306, 0.0
      %v311 = vsel %vm212, %v307, 0.0
      %v312 = vmul.f32 %v308, %v308
      %v313 = vmul.f32 %v309, %v309
      %v314 = vmul.f32 %v310, %v310
      %v315 = vmul.f32 %v311, %v311
      %v316 = vadd.f32 %v312, %v314
      %v317 = vadd.f32 %v313, %v315
      %v318 = vrsqrt.pop %v316
      %v319 = vmul.f32 %v316, %v318
      %vm320 = vcmp.eq.f32.partialorder %v316, inf
      %v321 = vsel %vm320, %v316, %v319
      %vm322 = vcmp.eq.f32.partialorder %v316, 0.0
      %v323 = vand.u32 %v316, 2147483648
      %v324 = vsel %vm322, %v323, %v321
      %v325 = vrsqrt.pop %v317
      %v326 = vmul.f32 %v317, %v325
      %vm327 = vcmp.eq.f32.partialorder %v317, inf
      %v328 = vsel %vm327, %v317, %v326
      %vm329 = vcmp.eq.f32.partialorder %v317, 0.0
      %v330 = vand.u32 %v317, 2147483648
      %v331 = vsel %vm329, %v330, %v328
      %v332 = vmax.f32 %v324, 1e-30
      %v333 = vmax.f32 %v331, 1e-30
      %v334 = vrcp.pop %v332
      %v335 = vmul.f32 1.0, %v334
      %v336 = vrcp.pop %v333
      %v337 = vmul.f32 1.0, %v336
      %vm338 = vcmp.gt.f32.partialorder %v324, 0.0
      %vm339 = vcmp.gt.f32.partialorder %v331, 0.0
      %vm340 = vcmask 130048
      %341 = vst.msk [vmem:[%s185] sm:$0xff] %vm340, %v324
      %342 = vst.msk [vmem:[%s185 + $0x8] sm:$0xff] %vm340, %v331
      %v343 = vand.u32 2147483647, %v308
      %v344 = vand.u32 2147483647, %v309
      %v345 = vmul.f32 %v343, %v335
      %v346 = vmul.f32 %v344, %v337
      %v347 = vsel %vm338, %v345, 1.0
      %v348 = vsel %vm339, %v346, 1.0
      %349 = vst.msk [vmem:[%s190] sm:$0xff] %vm340, %v347
      %350 = vst.msk [vmem:[%s190 + $0x8] sm:$0xff] %vm340, %v348
      %v351 = vand.u32 2147483647, %v310
      %v352 = vand.u32 2147483647, %v311
      %v353 = vmul.f32 %v351, %v335
      %v354 = vmul.f32 %v352, %v337
      %v355 = vsel %vm338, %v353, 0.0
      %v356 = vsel %vm339, %v354, 0.0
      %357 = vst.msk [vmem:[%s195] sm:$0xff] %vm340, %v355
      %358 = vst.msk [vmem:[%s195 + $0x8] sm:$0xff] %vm340, %v356
      %p359 = scmp.lt.s32.totalorder %s15, 1
      %s360 = scalar_select %p359, %s15, 1
      %s361 = smul.addr %s360, 2
      %s362 = smul.addr %s361, 8
      %s363 = scalar_lea.vmem %s1, %s362
      %p364 = scmp.lt.s32.totalorder %s15, 1
      %s365 = scalar_select %p364, %s15, 1
      %s366 = smul.addr %s365, 2
      %s367 = smul.addr %s366, 8
      %s368 = scalar_lea.vmem %s2, %s367
      %p369 = scmp.lt.s32.totalorder %s15, 1
      %s370 = scalar_select %p369, %s15, 1
      %s371 = smul.addr %s370, 2
      %s372 = smul.addr %s371, 8
      %s373 = scalar_lea.vmem %s3, %s372
      // Predicated region
      $region25: #{depth_guided_ranking_loss.4} parent=23 // pred_check
        %p374 = pneg %p59
      $region26: #{depth_guided_ranking_loss.4} parent=23 // pred_check_branch
        %376 = sbr.rel (%p374) target = $region28
      $region27: #{depth_guided_ranking_loss.4} parent=23 // pred_region
        _
      $region28: #{depth_guided_ranking_loss.4} parent=23 // pred_fallthru
        _
      // Predicated region
      $region29: #{depth_guided_ranking_loss.4} parent=23 // pred_check
        %p377 = pneg %p85
      $region30: #{depth_guided_ranking_loss.4} parent=23 // pred_check_branch
        %379 = sbr.rel (%p377) target = $region32
      $region31: #{depth_guided_ranking_loss.4} parent=23 // pred_region
        _
      $region32: #{depth_guided_ranking_loss.4} parent=23 // pred_fallthru
        _
      // Predicated region
      $region33: #{depth_guided_ranking_loss.4} parent=23 // pred_check
        %p380 = pneg %p111
      $region34: #{depth_guided_ranking_loss.4} parent=23 // pred_check_branch
        %382 = sbr.rel (%p380) target = $region36
      $region35: #{depth_guided_ranking_loss.4} parent=23 // pred_region
        _
      $region36: #{depth_guided_ranking_loss.4} parent=23 // pred_fallthru
        _
    $region24: #{depth_guided_ranking_loss.4} parent=5 // pred_fallthru
      _
    %p383 = scmp.le.s32.totalorder 2, %s10
    // Predicated region
    $region37: #{depth_guided_ranking_loss.4} parent=5 // pred_check
      %p384 = pneg %p383
    $region38: #{depth_guided_ranking_loss.4} parent=5 // pred_check_branch
      %386 = sbr.rel (%p384) target = $region40
    $region39: #{depth_guided_ranking_loss.4} parent=5 // pred_region
      %s387 = ssub.s32 %s10, 2
      // Predicated region
      $region41: #{depth_guided_ranking_loss.4} parent=39 // pred_check
        %p388 = pneg %p65
      $region42: #{depth_guided_ranking_loss.4} parent=39 // pred_check_branch
        %390 = sbr.rel (%p388) target = $region44
      $region43: #{depth_guided_ranking_loss.4} parent=39 // pred_region
        %p391 = scmp.lt.s32.totalorder %s16, 1
        %s392 = scalar_select %p391, %s16, 1
        %s393 = smul.addr %s392, 2
        %s394 = smul.addr %s393, 8
        %s395 = scalar_lea.vmem %s1, %s394
      $region44: #{depth_guided_ranking_loss.4} parent=39 // pred_fallthru
        _
      // Predicated region
      $region45: #{depth_guided_ranking_loss.4} parent=39 // pred_check
        %p396 = pneg %p91
      $region46: #{depth_guided_ranking_loss.4} parent=39 // pred_check_branch
        %398 = sbr.rel (%p396) target = $region48
      $region47: #{depth_guided_ranking_loss.4} parent=39 // pred_region
        %p399 = scmp.lt.s32.totalorder %s16, 1
        %s400 = scalar_select %p399, %s16, 1
        %s401 = smul.addr %s400, 2
        %s402 = smul.addr %s401, 8
        %s403 = scalar_lea.vmem %s2, %s402
      $region48: #{depth_guided_ranking_loss.4} parent=39 // pred_fallthru
        _
      // Predicated region
      $region49: #{depth_guided_ranking_loss.4} parent=39 // pred_check
        %p404 = pneg %p117
      $region50: #{depth_guided_ranking_loss.4} parent=39 // pred_check_branch
        %406 = sbr.rel (%p404) target = $region52
      $region51: #{depth_guided_ranking_loss.4} parent=39 // pred_region
        %p407 = scmp.lt.s32.totalorder %s16, 1
        %s408 = scalar_select %p407, %s16, 1
        %s409 = smul.addr %s408, 2
        %s410 = smul.addr %s409, 8
        %s411 = scalar_lea.vmem %s3, %s410
      $region52: #{depth_guided_ranking_loss.4} parent=39 // pred_fallthru
        _
    $region40: #{depth_guided_ranking_loss.4} parent=5 // pred_fallthru
      _
  $region6: #{depth_guided_ranking_loss.4} parent=0 // loop_footer
    %s14 = sadd.s32 1, %s10
  $region7: #{depth_guided_ranking_loss.4} parent=0 // loop_footer_branch
    %9 = sbr.rel target = $region3
  $region8: #{depth_guided_ranking_loss.4} parent=0 // loop_exit
    _

// kernel: depth_guided_ranking_loss.5
$region0: #{depth_guided_ranking_loss.5}
  #allocation0 [shape = 'u32[]', space=smem, size = 0x4, offset = 0x4, fixed_abs, tag = 'smem constant byte address 0x4 - core index']
  #allocation1 [shape = 'u32[144,128]{1,0:T(1,128)}', space=vmem, size = 0x12000, scoped, tag = 'internal scratch']
  #allocation2 [shape = 'f32[1,1,128]{2,1,0:T(1,128)}', space=vmem, size = 0x200, scoped, tag = 'scratch operand']
  %s0 = inlined_call_operand.vmem [shape: f32[2,1,768], index: 0, kind: input, shape index: {}]
  %s1 = inlined_call_operand.vmem [shape: f32[2,1,768], index: 1, kind: input, shape index: {}]
  %s2 = inlined_call_operand.vmem [shape: f32[2,1,768], index: 2, kind: input, shape index: {}]
  %s3 = inlined_call_operand.vmem [shape: f32[2,1,768], index: 3, kind: input, shape index: {}]
  %s4 = inlined_call_operand.vmem [shape: f32[2,1,768], index: 4, kind: input, shape index: {}]
  %s5 = inlined_call_operand.vmem [shape: f32[2,1,768], index: 5, kind: input, shape index: {}]
  %s6 = inlined_call_operand.vmem [shape: f32[2,1,128], index: 6, kind: output, shape index: {}]
  %s7 = sld [smem:[#allocation0]]
  $region65: #{depth_guided_ranking_loss.5} parent=0
    _
  %s9 = ssub.s32 1, %s7
  %s10 = scalar_select 0, %s9, %s7
  loop: start=0, step=1, limit=4
  $region2: #{depth_guided_ranking_loss.5} parent=0 // loop_pre_header
    _
  $region3: #{depth_guided_ranking_loss.5} parent=0 // loop_header
    %s12 = sphi 0, %s16
    %p13 = scmp.ge.s32.totalorder %s12, 4
    %s19 = sphi 0, %s31
    %s20 = sphi 0, %s27
    %s21 = sphi 0, %s19
    %s22 = sphi 0, %s20
    %s23 = sphi 0, %s21
    %s24 = sphi 0, %s22
    %s36 = sphi 0, %s38
    %s39 = sphi 0, %s36
    %s40 = sphi 0, %s39
    %s56 = sphi 0, %s40
    %s64 = sphi 0, %s66
    %s67 = sphi 0, %s64
    %s68 = sphi 0, %s67
    %s84 = sphi 0, %s68
    %s92 = sphi 0, %s94
    %s95 = sphi 0, %s92
    %s96 = sphi 0, %s95
    %s112 = sphi 0, %s96
    %s120 = sphi 0, %s122
    %s123 = sphi 0, %s120
    %s124 = sphi 0, %s123
    %s140 = sphi 0, %s124
    %s148 = sphi 0, %s150
    %s151 = sphi 0, %s148
    %s152 = sphi 0, %s151
    %s168 = sphi 0, %s152
    %s176 = sphi 0, %s178
    %s179 = sphi 0, %s176
    %s180 = sphi 0, %s179
    %s196 = sphi 0, %s180
    %s202 = sphi 0, %s204
    %s205 = sphi 0, %s202
    %s206 = sphi 0, %s205
    %s222 = sphi 0, %s206
  $region4: #{depth_guided_ranking_loss.5} parent=0 // loop_header_branch
    %15 = sbr.rel (%p13) target = $region8
  $region5: #{depth_guided_ranking_loss.5} parent=0 // loop_body
    %s17 = ssub.s32 %s12, 1
    %s18 = ssub.s32 %s12, 2
    %s25 = sadd.s32 1, %s20
    %p26 = scmp.ge.s32.totalorder %s25, 1
    %s27 = scalar_select %p26, 0, %s25
    %s28 = sadd.s32 1, %s19
    %s29 = scalar_select %p26, %s28, %s19
    %p30 = scmp.ge.s32.totalorder %s29, 2
    %s31 = scalar_select %p30, 0, %s29
    %s32 = ssub.s32 %s19, %s31
    %s33 = ssub.s32 %s20, %s27
    %s34 = sor.u32 %s32, %s33
    %p35 = scmp.eq.s32.totalorder %s34, 0
    %s37 = sadd.s32 %s36, 1
    %s38 = scalar_select %p35, %s36, %s37
    %p41 = pneg %p35
    %p42 = scmp.eq.s32.totalorder %s12, 1
    %p43 = por %p41, %p42
    %p44 = scmp.ne.s32.totalorder %s36, %s39
    %p45 = scmp.eq.s32.totalorder %s12, 0
    %p46 = por %p44, %p45
    %p47 = scmp.ne.s32.totalorder %s36, %s39
    %p48 = scmp.eq.s32.totalorder %s17, 1
    %p49 = por %p47, %p48
    %p50 = scmp.ne.s32.totalorder %s39, %s40
    %p51 = scmp.eq.s32.totalorder %s17, 0
    %p52 = por %p50, %p51
    %p53 = scmp.ne.s32.totalorder %s39, %s40
    %p54 = scmp.eq.s32.totalorder %s18, 1
    %p55 = por %p53, %p54
    %p57 = scmp.ne.s32.totalorder %s40, %s56
    %p58 = scmp.eq.s32.totalorder %s18, 0
    %p59 = por %p57, %p58
    %s60 = ssub.s32 %s19, %s31
    %s61 = ssub.s32 %s20, %s27
    %s62 = sor.u32 %s60, %s61
    %p63 = scmp.eq.s32.totalorder %s62, 0
    %s65 = sadd.s32 %s64, 1
    %s66 = scalar_select %p63, %s64, %s65
    %p69 = pneg %p63
    %p70 = scmp.eq.s32.totalorder %s12, 1
    %p71 = por %p69, %p70
    %p72 = scmp.ne.s32.totalorder %s64, %s67
    %p73 = scmp.eq.s32.totalorder %s12, 0
    %p74 = por %p72, %p73
    %p75 = scmp.ne.s32.totalorder %s64, %s67
    %p76 = scmp.eq.s32.totalorder %s17, 1
    %p77 = por %p75, %p76
    %p78 = scmp.ne.s32.totalorder %s67, %s68
    %p79 = scmp.eq.s32.totalorder %s17, 0
    %p80 = por %p78, %p79
    %p81 = scmp.ne.s32.totalorder %s67, %s68
    %p82 = scmp.eq.s32.totalorder %s18, 1
    %p83 = por %p81, %p82
    %p85 = scmp.ne.s32.totalorder %s68, %s84
    %p86 = scmp.eq.s32.totalorder %s18, 0
    %p87 = por %p85, %p86
    %s88 = ssub.s32 %s19, %s31
    %s89 = ssub.s32 %s20, %s27
    %s90 = sor.u32 %s88, %s89
    %p91 = scmp.eq.s32.totalorder %s90, 0
    %s93 = sadd.s32 %s92, 1
    %s94 = scalar_select %p91, %s92, %s93
    %p97 = pneg %p91
    %p98 = scmp.eq.s32.totalorder %s12, 1
    %p99 = por %p97, %p98
    %p100 = scmp.ne.s32.totalorder %s92, %s95
    %p101 = scmp.eq.s32.totalorder %s12, 0
    %p102 = por %p100, %p101
    %p103 = scmp.ne.s32.totalorder %s92, %s95
    %p104 = scmp.eq.s32.totalorder %s17, 1
    %p105 = por %p103, %p104
    %p106 = scmp.ne.s32.totalorder %s95, %s96
    %p107 = scmp.eq.s32.totalorder %s17, 0
    %p108 = por %p106, %p107
    %p109 = scmp.ne.s32.totalorder %s95, %s96
    %p110 = scmp.eq.s32.totalorder %s18, 1
    %p111 = por %p109, %p110
    %p113 = scmp.ne.s32.totalorder %s96, %s112
    %p114 = scmp.eq.s32.totalorder %s18, 0
    %p115 = por %p113, %p114
    %s116 = ssub.s32 %s19, %s31
    %s117 = ssub.s32 %s20, %s27
    %s118 = sor.u32 %s116, %s117
    %p119 = scmp.eq.s32.totalorder %s118, 0
    %s121 = sadd.s32 %s120, 1
    %s122 = scalar_select %p119, %s120, %s121
    %p125 = pneg %p119
    %p126 = scmp.eq.s32.totalorder %s12, 1
    %p127 = por %p125, %p126
    %p128 = scmp.ne.s32.totalorder %s120, %s123
    %p129 = scmp.eq.s32.totalorder %s12, 0
    %p130 = por %p128, %p129
    %p131 = scmp.ne.s32.totalorder %s120, %s123
    %p132 = scmp.eq.s32.totalorder %s17, 1
    %p133 = por %p131, %p132
    %p134 = scmp.ne.s32.totalorder %s123, %s124
    %p135 = scmp.eq.s32.totalorder %s17, 0
    %p136 = por %p134, %p135
    %p137 = scmp.ne.s32.totalorder %s123, %s124
    %p138 = scmp.eq.s32.totalorder %s18, 1
    %p139 = por %p137, %p138
    %p141 = scmp.ne.s32.totalorder %s124, %s140
    %p142 = scmp.eq.s32.totalorder %s18, 0
    %p143 = por %p141, %p142
    %s144 = ssub.s32 %s19, %s31
    %s145 = ssub.s32 %s20, %s27
    %s146 = sor.u32 %s144, %s145
    %p147 = scmp.eq.s32.totalorder %s146, 0
    %s149 = sadd.s32 %s148, 1
    %s150 = scalar_select %p147, %s148, %s149
    %p153 = pneg %p147
    %p154 = scmp.eq.s32.totalorder %s12, 1
    %p155 = por %p153, %p154
    %p156 = scmp.ne.s32.totalorder %s148, %s151
    %p157 = scmp.eq.s32.totalorder %s12, 0
    %p158 = por %p156, %p157
    %p159 = scmp.ne.s32.totalorder %s148, %s151
    %p160 = scmp.eq.s32.totalorder %s17, 1
    %p161 = por %p159, %p160
    %p162 = scmp.ne.s32.totalorder %s151, %s152
    %p163 = scmp.eq.s32.totalorder %s17, 0
    %p164 = por %p162, %p163
    %p165 = scmp.ne.s32.totalorder %s151, %s152
    %p166 = scmp.eq.s32.totalorder %s18, 1
    %p167 = por %p165, %p166
    %p169 = scmp.ne.s32.totalorder %s152, %s168
    %p170 = scmp.eq.s32.totalorder %s18, 0
    %p171 = por %p169, %p170
    %s172 = ssub.s32 %s19, %s31
    %s173 = ssub.s32 %s20, %s27
    %s174 = sor.u32 %s172, %s173
    %p175 = scmp.eq.s32.totalorder %s174, 0
    %s177 = sadd.s32 %s176, 1
    %s178 = scalar_select %p175, %s176, %s177
    %p181 = pneg %p175
    %p182 = scmp.eq.s32.totalorder %s12, 1
    %p183 = por %p181, %p182
    %p184 = scmp.ne.s32.totalorder %s176, %s179
    %p185 = scmp.eq.s32.totalorder %s12, 0
    %p186 = por %p184, %p185
    %p187 = scmp.ne.s32.totalorder %s176, %s179
    %p188 = scmp.eq.s32.totalorder %s17, 1
    %p189 = por %p187, %p188
    %p190 = scmp.ne.s32.totalorder %s179, %s180
    %p191 = scmp.eq.s32.totalorder %s17, 0
    %p192 = por %p190, %p191
    %p193 = scmp.ne.s32.totalorder %s179, %s180
    %p194 = scmp.eq.s32.totalorder %s18, 1
    %p195 = por %p193, %p194
    %p197 = scmp.ne.s32.totalorder %s180, %s196
    %p198 = scmp.eq.s32.totalorder %s18, 0
    %p199 = por %p197, %p198
    %s200 = ssub.s32 %s19, %s31
    %p201 = scmp.eq.s32.totalorder %s200, 0
    %s203 = sadd.s32 %s202, 1
    %s204 = scalar_select %p201, %s202, %s203
    %p207 = pneg %p201
    %p208 = scmp.eq.s32.totalorder %s12, 1
    %p209 = por %p207, %p208
    %p210 = scmp.ne.s32.totalorder %s202, %s205
    %p211 = scmp.eq.s32.totalorder %s12, 0
    %p212 = por %p210, %p211
    %p213 = scmp.ne.s32.totalorder %s202, %s205
    %p214 = scmp.eq.s32.totalorder %s17, 1
    %p215 = por %p213, %p214
    %p216 = scmp.ne.s32.totalorder %s205, %s206
    %p217 = scmp.eq.s32.totalorder %s17, 0
    %p218 = por %p216, %p217
    %p219 = scmp.ne.s32.totalorder %s205, %s206
    %p220 = scmp.eq.s32.totalorder %s18, 1
    %p221 = por %p219, %p220
    %p223 = scmp.ne.s32.totalorder %s206, %s222
    %p224 = scmp.eq.s32.totalorder %s18, 0
    %p225 = por %p223, %p224
    %p226 = scmp.le.s32.totalorder 1, %s12
    %p227 = scmp.lt.s32.totalorder %s12, 3
    %p228 = pnand %p226, %p227
    %p229 = pneg %p228
    // Predicated region
    $region9: #{depth_guided_ranking_loss.5} parent=5 // pred_check
      _
    $region10: #{depth_guided_ranking_loss.5} parent=5 // pred_check_branch
      %231 = sbr.rel (%p228) target = $region12
    $region11: #{depth_guided_ranking_loss.5} parent=5 // pred_region
      %s232 = ssub.s32 %s12, 1
    $region12: #{depth_guided_ranking_loss.5} parent=5 // pred_fallthru
      _
    %p233 = scmp.lt.s32.totalorder %s12, 2
    // Predicated region
    $region13: #{depth_guided_ranking_loss.5} parent=5 // pred_check
      %p234 = pneg %p233
    $region14: #{depth_guided_ranking_loss.5} parent=5 // pred_check_branch
      %236 = sbr.rel (%p234) target = $region16
    $region15: #{depth_guided_ranking_loss.5} parent=5 // pred_region
      // Predicated region
      $region17: #{depth_guided_ranking_loss.5} parent=15 // pred_check
        %p237 = pneg %p46
      $region18: #{depth_guided_ranking_loss.5} parent=15 // pred_check_branch
        %239 = sbr.rel (%p237) target = $region20
      $region19: #{depth_guided_ranking_loss.5} parent=15 // pred_region
        %s240 = smul.u32 6, %s20
        %p241 = scmp.lt.s32.totalorder %s19, 1
        %s242 = scalar_select %p241, %s19, 1
        %p243 = scmp.lt.s32.totalorder %s240, 5
        %s244 = scalar_select %p243, %s240, 5
        %s245 = smul.addr %s242, 6
        %s246 = sadd.s32 %s244, %s245
        %s247 = scalar_lea.vmem %s0, %s246
        %s248 = smul.u32 6, %s20
      $region20: #{depth_guided_ranking_loss.5} parent=15 // pred_fallthru
        _
      // Predicated region
      $region21: #{depth_guided_ranking_loss.5} parent=15 // pred_check
        %p249 = pneg %p74
      $region22: #{depth_guided_ranking_loss.5} parent=15 // pred_check_branch
        %251 = sbr.rel (%p249) target = $region24
      $region23: #{depth_guided_ranking_loss.5} parent=15 // pred_region
        %s252 = smul.u32 6, %s20
        %p253 = scmp.lt.s32.totalorder %s19, 1
        %s254 = scalar_select %p253, %s19, 1
        %p255 = scmp.lt.s32.totalorder %s252, 5
        %s256 = scalar_select %p255, %s252, 5
        %s257 = smul.addr %s254, 6
        %s258 = sadd.s32 %s256, %s257
        %s259 = scalar_lea.vmem %s1, %s258
        %s260 = smul.u32 6, %s20
      $region24: #{depth_guided_ranking_loss.5} parent=15 // pred_fallthru
        _
      // Predicated region
      $region25: #{depth_guided_ranking_loss.5} parent=15 // pred_check
        %p261 = pneg %p102
      $region26: #{depth_guided_ranking_loss.5} parent=15 // pred_check_branch
        %263 = sbr.rel (%p261) target = $region28
      $region27: #{depth_guided_ranking_loss.5} parent=15 // pred_region
        %s264 = smul.u32 6, %s20
        %p265 = scmp.lt.s32.totalorder %s19, 1
        %s266 = scalar_select %p265, %s19, 1
        %p267 = scmp.lt.s32.totalorder %s264, 5
        %s268 = scalar_select %p267, %s264, 5
        %s269 = smul.addr %s266, 6
        %s270 = sadd.s32 %s268, %s269
        %s271 = scalar_lea.vmem %s2, %s270
        %s272 = smul.u32 6, %s20
      $region28: #{depth_guided_ranking_loss.5} parent=15 // pred_fallthru
        _
      // Predicated region
      $region29: #{depth_guided_ranking_loss.5} parent=15 // pred_check
        %p273 = pneg %p130
      $region30: #{depth_guided_ranking_loss.5} parent=15 // pred_check_branch
        %275 = sbr.rel (%p273) target = $region32
      $region31: #{depth_guided_ranking_loss.5} parent=15 // pred_region
        %s276 = smul.u32 6, %s20
        %p277 = scmp.lt.s32.totalorder %s19, 1
        %s278 = scalar_select %p277, %s19, 1
        %p279 = scmp.lt.s32.totalorder %s276, 5
        %s280 = scalar_select %p279, %s276, 5
        %s281 = smul.addr %s278, 6
        %s282 = sadd.s32 %s280, %s281
        %s283 = scalar_lea.vmem %s3, %s282
        %s284 = smul.u32 6, %s20
      $region32: #{depth_guided_ranking_loss.5} parent=15 // pred_fallthru
        _
      // Predicated region
      $region33: #{depth_guided_ranking_loss.5} parent=15 // pred_check
        %p285 = pneg %p158
      $region34: #{depth_guided_ranking_loss.5} parent=15 // pred_check_branch
        %287 = sbr.rel (%p285) target = $region36
      $region35: #{depth_guided_ranking_loss.5} parent=15 // pred_region
        %s288 = smul.u32 6, %s20
        %p289 = scmp.lt.s32.totalorder %s19, 1
        %s290 = scalar_select %p289, %s19, 1
        %p291 = scmp.lt.s32.totalorder %s288, 5
        %s292 = scalar_select %p291, %s288, 5
        %s293 = smul.addr %s290, 6
        %s294 = sadd.s32 %s292, %s293
        %s295 = scalar_lea.vmem %s4, %s294
        %s296 = smul.u32 6, %s20
      $region36: #{depth_guided_ranking_loss.5} parent=15 // pred_fallthru
        _
      // Predicated region
      $region37: #{depth_guided_ranking_loss.5} parent=15 // pred_check
        %p297 = pneg %p186
      $region38: #{depth_guided_ranking_loss.5} parent=15 // pred_check_branch
        %299 = sbr.rel (%p297) target = $region40
      $region39: #{depth_guided_ranking_loss.5} parent=15 // pred_region
        %s300 = smul.u32 6, %s20
        %p301 = scmp.lt.s32.totalorder %s19, 1
        %s302 = scalar_select %p301, %s19, 1
        %p303 = scmp.lt.s32.totalorder %s300, 5
        %s304 = scalar_select %p303, %s300, 5
        %s305 = smul.addr %s302, 6
        %s306 = sadd.s32 %s304, %s305
        %s307 = scalar_lea.vmem %s5, %s306
        %s308 = smul.u32 6, %s20
      $region40: #{depth_guided_ranking_loss.5} parent=15 // pred_fallthru
        _
    $region16: #{depth_guided_ranking_loss.5} parent=5 // pred_fallthru
      _
    %p309 = scmp.le.s32.totalorder 1, %s12
    %p310 = scmp.lt.s32.totalorder %s12, 3
    %p311 = pnand %p309, %p310
    %p312 = pneg %p311
    // Predicated region
    $region41: #{depth_guided_ranking_loss.5} parent=5 // pred_check
      _
    $region42: #{depth_guided_ranking_loss.5} parent=5 // pred_check_branch
      %314 = sbr.rel (%p311) target = $region44
    $region43: #{depth_guided_ranking_loss.5} parent=5 // pred_region
      %s315 = ssub.s32 %s12, 1
      %s316 = smul.u32 6, %s22
      %p317 = scmp.lt.s32.totalorder %s21, 1
      %s318 = scalar_select %p317, %s21, 1
      %p319 = scmp.lt.s32.totalorder %s316, 5
      %s320 = scalar_select %p319, %s316, 5
      %s321 = smul.addr %s318, 6
      %s322 = sadd.s32 %s320, %s321
      %s323 = scalar_lea.vmem %s0, %s322
      %p324 = pneg %p52
      %p325 = pneg %p49
      %s326 = smul.u32 6, %s22
      %p327 = scmp.lt.s32.totalorder %s21, 1
      %s328 = scalar_select %p327, %s21, 1
      %p329 = scmp.lt.s32.totalorder %s326, 5
      %s330 = scalar_select %p329, %s326, 5
      %s331 = smul.addr %s328, 6
      %s332 = sadd.s32 %s330, %s331
      %s333 = scalar_lea.vmem %s1, %s332
      %p334 = pneg %p80
      %p335 = pneg %p77
      %s336 = smul.u32 6, %s22
      %p337 = scmp.lt.s32.totalorder %s21, 1
      %s338 = scalar_select %p337, %s21, 1
      %p339 = scmp.lt.s32.totalorder %s336, 5
      %s340 = scalar_select %p339, %s336, 5
      %s341 = smul.addr %s338, 6
      %s342 = sadd.s32 %s340, %s341
      %s343 = scalar_lea.vmem %s2, %s342
      %p344 = pneg %p108
      %p345 = pneg %p105
      %s346 = smul.u32 6, %s22
      %p347 = scmp.lt.s32.totalorder %s21, 1
      %s348 = scalar_select %p347, %s21, 1
      %p349 = scmp.lt.s32.totalorder %s346, 5
      %s350 = scalar_select %p349, %s346, 5
      %s351 = smul.addr %s348, 6
      %s352 = sadd.s32 %s350, %s351
      %s353 = scalar_lea.vmem %s3, %s352
      %p354 = pneg %p136
      %p355 = pneg %p133
      %s356 = smul.u32 6, %s22
      %p357 = scmp.lt.s32.totalorder %s21, 1
      %s358 = scalar_select %p357, %s21, 1
      %p359 = scmp.lt.s32.totalorder %s356, 5
      %s360 = scalar_select %p359, %s356, 5
      %s361 = smul.addr %s358, 6
      %s362 = sadd.s32 %s360, %s361
      %s363 = scalar_lea.vmem %s4, %s362
      %p364 = pneg %p164
      %p365 = pneg %p161
      %s366 = smul.u32 6, %s22
      %p367 = scmp.lt.s32.totalorder %s21, 1
      %s368 = scalar_select %p367, %s21, 1
      %p369 = scmp.lt.s32.totalorder %s366, 5
      %s370 = scalar_select %p369, %s366, 5
      %s371 = smul.addr %s368, 6
      %s372 = sadd.s32 %s370, %s371
      %s373 = scalar_lea.vmem %s5, %s372
      %p374 = pneg %p192
      %p375 = pneg %p189
      %p376 = pneg %p218
      %p377 = pneg %p215
      %p378 = scmp.lt.s32.totalorder %s21, 1
      %s379 = scalar_select %p378, %s21, 1
      %s380 = scalar_lea.vmem %s6, %s379
      %s381 = smul.u32 6, %s22
      %p382 = scmp.lt.s32.totalorder %s21, 1
      %s383 = scalar_select %p382, %s21, 1
      %p384 = scmp.lt.s32.totalorder %s381, 5
      %s385 = scalar_select %p384, %s381, 5
      %s386 = smul.addr %s383, 6
      %s387 = sadd.s32 %s385, %s386
      %s388 = scalar_lea.vmem %s0, %s387
      %s389 = smul.u32 6, %s22
      %s390 = smul.u32 6, %s22
      %p391 = scmp.lt.s32.totalorder %s21, 1
      %s392 = scalar_select %p391, %s21, 1
      %p393 = scmp.lt.s32.totalorder %s390, 5
      %s394 = scalar_select %p393, %s390, 5
      %s395 = smul.addr %s392, 6
      %s396 = sadd.s32 %s394, %s395
      %s397 = scalar_lea.vmem %s1, %s396
      %s398 = smul.u32 6, %s22
      %s399 = smul.u32 6, %s22
      %p400 = scmp.lt.s32.totalorder %s21, 1
      %s401 = scalar_select %p400, %s21, 1
      %p402 = scmp.lt.s32.totalorder %s399, 5
      %s403 = scalar_select %p402, %s399, 5
      %s404 = smul.addr %s401, 6
      %s405 = sadd.s32 %s403, %s404
      %s406 = scalar_lea.vmem %s2, %s405
      %s407 = smul.u32 6, %s22
      %s408 = smul.u32 6, %s22
      %p409 = scmp.lt.s32.totalorder %s21, 1
      %s410 = scalar_select %p409, %s21, 1
      %p411 = scmp.lt.s32.totalorder %s408, 5
      %s412 = scalar_select %p411, %s408, 5
      %s413 = smul.addr %s410, 6
      %s414 = sadd.s32 %s412, %s413
      %s415 = scalar_lea.vmem %s3, %s414
      %s416 = smul.u32 6, %s22
      %s417 = smul.u32 6, %s22
      %p418 = scmp.lt.s32.totalorder %s21, 1
      %s419 = scalar_select %p418, %s21, 1
      %p420 = scmp.lt.s32.totalorder %s417, 5
      %s421 = scalar_select %p420, %s417, 5
      %s422 = smul.addr %s419, 6
      %s423 = sadd.s32 %s421, %s422
      %s424 = scalar_lea.vmem %s4, %s423
      %s425 = smul.u32 6, %s22
      %s426 = smul.u32 6, %s22
      %p427 = scmp.lt.s32.totalorder %s21, 1
      %s428 = scalar_select %p427, %s21, 1
      %p429 = scmp.lt.s32.totalorder %s426, 5
      %s430 = scalar_select %p429, %s426, 5
      %s431 = smul.addr %s428, 6
      %s432 = sadd.s32 %s430, %s431
      %s433 = scalar_lea.vmem %s5, %s432
      %s434 = smul.u32 6, %s22
      %p435 = scmp.lt.s32.totalorder %s21, 1
      %s436 = scalar_select %p435, %s21, 1
      %s437 = scalar_lea.vmem %s6, %s436
      %p438 = scmp.eq.s32.totalorder %s22, 0
      // Predicated region
      $region45: #{depth_guided_ranking_loss.5} parent=43 // pred_check
        %p439 = pneg %p438
      $region46: #{depth_guided_ranking_loss.5} parent=43 // pred_check_branch
        %441 = sbr.rel (%p439) target = $region48
      $region47: #{depth_guided_ranking_loss.5} parent=43 // pred_region
        %442 = vst [vmem:[#allocation2] sm:$0x1] 0.0
      $region48: #{depth_guided_ranking_loss.5} parent=43 // pred_fallthru
        _
      %v443 = vld [vmem:[%s388] sm:$0x3f]
      %v444 = vld [vmem:[%s397] sm:$0x3f]
      %v445 = vld [vmem:[%s406] sm:$0x3f]
      %v446 = vld [vmem:[%s415] sm:$0x3f]
      %v447 = vld [vmem:[%s424] sm:$0x3f]
      %v448 = vld [vmem:[%s433] sm:$0x3f]
      %v449 = vmul.f32 %v447, %v448
      %v450 = vadd.f32 %v445, 1e-06
      %v451 = vadd.f32 %v446, 1e-06
      %v452 = vrcp.pop %v451
      %v453 = vmul.f32 %v450, %v452
      %vm454 = vcmp.lt.f32.partialorder %v453, 1.03
      %vm455 = vcmp.gt.f32.partialorder %v453, 0.9708738
      %vm456 = vmand %vm454, %vm455
      %v457 = vsel %vm456, 1, 0
      %v458 = vcvt.s32.f32 %v457
      %vm459 = vcmp.ge.f32.partialorder %v453, 1.03
      %vm460 = vcmp.le.f32.partialorder %v453, 0.9708738
      %v461 = vsel %vm460, -1.0, 0.0
      %v462 = vsel %vm459, 1.0, %v461
      %v463 = vsub.f32 %v443, %v444
      %v464 = vmul.f32 %v463, %v463
      %v465 = vmul.f32 %v464, %v458
      %v466 = vsub.f32 %v444, %v443
      %v467 = vmul.f32 %v466, %v462
      %v468 = vmax.f32 %v467, 0.0
      %v469 = vand.u32 2147483647, %v467
      %v470 = vsub.f32 0.0, %v469
      %v471 = vmul.f32 %v470, 1.442695
      %v472 = vpow.pop %v471
      %v473 = vadd.f32 %v472, 1.0
      %v474 = vlog2.pop %v473
      %v475 = vmul.f32 %v474, 0.6931472
      %v476 = vadd.f32 %v468, %v475
      %v477 = vsub.f32 1.0, %v458
      %v478 = vmul.f32 %v476, %v477
      %v479 = vadd.f32 %v465, %v478
      %v480 = vmul.f32 %v479, %v449
      %v482 = vlaneseq
      %v483 = vshrl.u32 %v482, 7
      %v484 = vsub.s32 0, %v483
      %v485 = vrot.slane %v480, %v484
      %v486 = vlaneseq
      %v487 = vshrl.u32 %v486, 7
      %v488 = vsub.s32 1, %v487
      %v489 = vrot.slane %v480, %v488
      %v490 = vlaneseq
      %v491 = vshrl.u32 %v490, 7
      %v492 = vsub.s32 2, %v491
      %v493 = vrot.slane %v480, %v492
      %v494 = vlaneseq
      %v495 = vshrl.u32 %v494, 7
      %v496 = vsub.s32 3, %v495
      %v497 = vrot.slane %v480, %v496
      %v498 = vlaneseq
      %v499 = vshrl.u32 %v498, 7
      %v500 = vsub.s32 4, %v499
      %v501 = vrot.slane %v480, %v500
      %v502 = vlaneseq
      %v503 = vshrl.u32 %v502, 7
      %v504 = vsub.s32 5, %v503
      %v505 = vrot.slane %v480, %v504
      %vm512 = vcmask 1040384
      %v513 = vsel %vm512, %v485, 0.0
      %v514 = vsel %vm512, %v489, 0.0
      %v515 = vadd.f32 %v513, %v514
      %v516 = vsel %vm512, %v493, 0.0
      %v517 = vadd.f32 %v515, %v516
      %v518 = vsel %vm512, %v497, 0.0
      %v519 = vadd.f32 %v517, %v518
      %v520 = vsel %vm512, %v501, 0.0
      %v521 = vadd.f32 %v519, %v520
      %v522 = vsel %vm512, %v505, 0.0
      %v523 = vadd.f32 %v521, %v522
      %524 = vadd.xlane.f32.xlu0 %v523
      %v525 = vpop.xlane.xlu0 %524
      %v526 = vrot.slane %v525, 4
      %v527 = vadd.f32 %v525, %v526
      %v528 = vrot.slane %v527, 2
      %v529 = vadd.f32 %v527, %v528
      %v530 = vrot.slane %v529, 1
      %v531 = vadd.f32 %v529, %v530
      %s532 = vtos %v531
      %v533 = vld [vmem:[#allocation2] sm:$0x1]
      %v534 = vstv %s532
      %v535 = vadd.f32 %v533, %v534
      %536 = vst [vmem:[#allocation2] sm:$0x1] %v535
      // Predicated region
      $region49: #{depth_guided_ranking_loss.5} parent=43 // pred_check
        %p537 = pneg %p438
      $region50: #{depth_guided_ranking_loss.5} parent=43 // pred_check_branch
        %539 = sbr.rel (%p537) target = $region52
      $region51: #{depth_guided_ranking_loss.5} parent=43 // pred_region
        %v540 = vld [vmem:[#allocation2] sm:$0x1]
        %v541 = vmul.f32 %v540, 0.0013020834
        %542 = vst [vmem:[%s437] sm:$0x1] %v541
      $region52: #{depth_guided_ranking_loss.5} parent=43 // pred_fallthru
        _
      %p543 = scmp.lt.s32.totalorder %s21, 1
      %s544 = scalar_select %p543, %s21, 1
      %s545 = scalar_lea.vmem %s6, %s544
      // Predicated region
      $region53: #{depth_guided_ranking_loss.5} parent=43 // pred_check
        %p546 = pneg %p215
      $region54: #{depth_guided_ranking_loss.5} parent=43 // pred_check_branch
        %548 = sbr.rel (%p546) target = $region56
      $region55: #{depth_guided_ranking_loss.5} parent=43 // pred_region
        _
      $region56: #{depth_guided_ranking_loss.5} parent=43 // pred_fallthru
        _
    $region44: #{depth_guided_ranking_loss.5} parent=5 // pred_fallthru
      _
    %p549 = scmp.le.s32.totalorder 2, %s12
    // Predicated region
    $region57: #{depth_guided_ranking_loss.5} parent=5 // pred_check
      %p550 = pneg %p549
    $region58: #{depth_guided_ranking_loss.5} parent=5 // pred_check_branch
      %552 = sbr.rel (%p550) target = $region60
    $region59: #{depth_guided_ranking_loss.5} parent=5 // pred_region
      %s553 = ssub.s32 %s12, 2
      // Predicated region
      $region61: #{depth_guided_ranking_loss.5} parent=59 // pred_check
        %p554 = pneg %p221
      $region62: #{depth_guided_ranking_loss.5} parent=59 // pred_check_branch
        %556 = sbr.rel (%p554) target = $region64
      $region63: #{depth_guided_ranking_loss.5} parent=59 // pred_region
        %p557 = scmp.lt.s32.totalorder %s23, 1
        %s558 = scalar_select %p557, %s23, 1
        %s559 = scalar_lea.vmem %s6, %s558
      $region64: #{depth_guided_ranking_loss.5} parent=59 // pred_fallthru
        _
    $region60: #{depth_guided_ranking_loss.5} parent=5 // pred_fallthru
      _
  $region6: #{depth_guided_ranking_loss.5} parent=0 // loop_footer
    %s16 = sadd.s32 1, %s12
  $region7: #{depth_guided_ranking_loss.5} parent=0 // loop_footer_branch
    %11 = sbr.rel target = $region3
  $region8: #{depth_guided_ranking_loss.5} parent=0 // loop_exit
    _

</llo_original>
